<compile_context>
chip_gen: v5e
topology: v5e:2x2
jax: 0.10.0
libtpu: 0.0.40
codegen_flags: <defaults>
</compile_context>

<pallas_src>
import functools

import jax
import jax.numpy as jnp
from jax.experimental import pallas as pl
from jax.experimental.pallas import tpu as pltpu

_LANE = 128


def _salt_pepper_kernel(x_ref, m_ref, o_ref, *, p_salt, p_pepper):
    x = x_ref[...]
    m = m_ref[...]  # float32 uniform [0, 1)
    keep_thresh = jnp.float32(p_salt + p_pepper)
    pepper_thresh = jnp.float32(p_pepper)
    # mask >= p_salt+p_pepper -> keep x, else salt (+1)
    salted = jnp.where(m >= keep_thresh, x, jnp.ones_like(x))
    # mask >= p_pepper -> keep previous, else pepper (-1)
    o_ref[...] = jnp.where(m >= pepper_thresh, salted, jnp.full_like(x, -1))


def _apply_salt_pepper(x, mask, p_salt, p_pepper, tile_rows=2048):
    """Applies salt & pepper corruption given a precomputed uniform mask."""
    orig_shape = x.shape
    n = x.size

    flat_x = x.reshape(-1)
    flat_m = mask.reshape(-1)

    # Pad only to a multiple of 128 lanes (no-op for typical NCHW sizes).
    n_pad = pl.cdiv(n, _LANE) * _LANE
    if n_pad != n:
        flat_x = jnp.pad(flat_x, (0, n_pad - n))
        flat_m = jnp.pad(flat_m, (0, n_pad - n))

    rows = n_pad // _LANE
    x2d = flat_x.reshape(rows, _LANE)
    m2d = flat_m.reshape(rows, _LANE)

    # Large tiles; clamp to the actual row count (full-dim blocks are legal).
    tile_rows = int(max(1, min(tile_rows, rows)))
    grid = (pl.cdiv(rows, tile_rows),)

    bytes_accessed = (
        x2d.size * x2d.dtype.itemsize        # read x
        + m2d.size * m2d.dtype.itemsize      # read mask
        + x2d.size * x2d.dtype.itemsize      # write out
    )

    out2d = pl.pallas_call(
        functools.partial(
            _salt_pepper_kernel, p_salt=float(p_salt), p_pepper=float(p_pepper)
        ),
        out_shape=jax.ShapeDtypeStruct((rows, _LANE), x.dtype),
        grid=grid,
        in_specs=[
            pl.BlockSpec((tile_rows, _LANE), lambda i: (i, 0)),
            pl.BlockSpec((tile_rows, _LANE), lambda i: (i, 0)),
        ],
        out_specs=pl.BlockSpec((tile_rows, _LANE), lambda i: (i, 0)),
        compiler_params=pltpu.CompilerParams(
            dimension_semantics=("parallel",)
        ),
        cost_estimate=pl.CostEstimate(
            flops=2 * n, transcendentals=0, bytes_accessed=bytes_accessed
        ),
    )(x2d, m2d)

    out_flat = out2d.reshape(-1)
    if n_pad != n:
        out_flat = out_flat[:n]
    return out_flat.reshape(orig_shape)


def salt_pepper_noise(x, key, p_salt=0.0, p_pepper=0.0, tile_rows=2048):
    """Equivalent of SaltPepperNoise.forward: random salt/pepper corruption."""
    mask = jax.random.uniform(key, x.shape, dtype=jnp.float32)  # rand_like(x)
    return _apply_salt_pepper(x, mask, p_salt, p_pepper, tile_rows)


if __name__ == "__main__":
    key = jax.random.PRNGKey(0)
    x_key, noise_key = jax.random.split(key)
    # Typical NCHW input: batch=2, channels=4, spatial=16x16.
    x = jax.random.normal(x_key, (2, 4, 16, 16), dtype=jnp.float32)

    p_salt, p_pepper = 0.1, 0.1
    out = salt_pepper_noise(x, noise_key, p_salt=p_salt, p_pepper=p_pepper)
    out = jax.block_until_ready(out)

    # Pure-JAX reference using the identical mask (same key/shape/dtype).
    mask = jax.random.uniform(noise_key, x.shape, dtype=jnp.float32)
    ref = jnp.where(
        mask >= p_pepper,
        jnp.where(mask >= p_salt + p_pepper, x, jnp.ones_like(x)),
        jnp.full_like(x, -1.0),
    )

    assert out.shape == x.shape and out.dtype == x.dtype
    assert jnp.array_equal(out, ref), float(jnp.max(jnp.abs(out - ref)))

    # Sanity: corruption fractions are roughly p_pepper / p_salt.
    frac_pepper = float(jnp.mean(out == -1.0))
    frac_salt = float(jnp.mean(out == 1.0))
    assert 0.03 < frac_pepper < 0.2, frac_pepper
    assert 0.03 < frac_salt < 0.2, frac_salt

    print("KERNEL_OK")
</pallas_src>

<mosaic_0001>
module attributes {stable_mosaic.version = 11 : i64} {
  func.func @_salt_pepper_kernel(%arg0: i32, %arg1: memref<16x128xf32, #tpu.memory_space<vmem>>, %arg2: memref<16x128xf32, #tpu.memory_space<vmem>>, %arg3: memref<16x128xf32, #tpu.memory_space<vmem>>) attributes {dimension_semantics = [#tpu.dimension_semantics<parallel>], iteration_bounds = array<i64: 1>, scalar_prefetch = 0 : i64, scratch_operands = 0 : i64, tpu.core_type = #tpu.core_type<tc>, window_params = [{transform_indices = @transform_0, window_bounds = array<i64: 16, 128>}, {transform_indices = @transform_1, window_bounds = array<i64: 16, 128>}, {transform_indices = @transform_2, window_bounds = array<i64: 16, 128>}]} {
    %c0 = arith.constant 0 : index
    %c0_0 = arith.constant 0 : index
    %0 = vector.load %arg1[%c0, %c0_0] : memref<16x128xf32, #tpu.memory_space<vmem>>, vector<16x128xf32>
    %c0_1 = arith.constant 0 : index
    %c0_2 = arith.constant 0 : index
    %1 = vector.load %arg2[%c0_1, %c0_2] : memref<16x128xf32, #tpu.memory_space<vmem>>, vector<16x128xf32>
    %cst = arith.constant 2.000000e-01 : f32
    %2 = vector.broadcast %cst : f32 to vector<16x128xf32>
    %3 = arith.cmpf oge, %1, %2 : vector<16x128xf32>
    %cst_3 = arith.constant 1.000000e+00 : f32
    %4 = vector.broadcast %cst_3 : f32 to vector<16x128xf32>
    %5 = arith.select %3, %0, %4 : vector<16x128xi1>, vector<16x128xf32>
    %cst_4 = arith.constant 1.000000e-01 : f32
    %6 = vector.broadcast %cst_4 : f32 to vector<16x128xf32>
    %7 = arith.cmpf oge, %1, %6 : vector<16x128xf32>
    %cst_5 = arith.constant -1.000000e+00 : f32
    %8 = vector.broadcast %cst_5 : f32 to vector<16x128xf32>
    %9 = arith.select %7, %5, %8 : vector<16x128xi1>, vector<16x128xf32>
    %c0_6 = arith.constant 0 : index
    %c0_7 = arith.constant 0 : index
    %10 = vector.load %arg3[%c0_6, %c0_7] : memref<16x128xf32, #tpu.memory_space<vmem>>, vector<16x128xf32>
    tpu.vector_store %arg3[%c0_6, %c0_7], %9 {strides = array<i32>} : memref<16x128xf32, #tpu.memory_space<vmem>>, vector<16x128xf32>,
    return
  }
  func.func @transform_0(%arg0: i32) -> (i32, i32) {
    %c0_i32 = arith.constant 0 : i32
    %c0_i32_0 = arith.constant 0 : i32
    return %arg0, %c0_i32 : i32, i32
  }
  func.func @transform_1(%arg0: i32) -> (i32, i32) {
    %c0_i32 = arith.constant 0 : i32
    %c0_i32_0 = arith.constant 0 : i32
    return %arg0, %c0_i32 : i32, i32
  }
  func.func @transform_2(%arg0: i32) -> (i32, i32) {
    %c0_i32 = arith.constant 0 : i32
    %c0_i32_0 = arith.constant 0 : i32
    return %arg0, %c0_i32 : i32, i32
  }
}

</mosaic_0001>

<llo_original>
// kernel: tpu_custom_call.1
$region0: #{tpu_custom_call.1}
  #allocation0 [shape = 'u32[]', space=smem, size = 0x4, offset = 0x4, fixed_abs, tag = 'smem constant byte address 0x4 - core index']
  #allocation1 [shape = 'u32[72,128]{1,0:T(1,128)}', space=vmem, size = 0x9000, scoped, tag = 'internal scratch']
  %s0 = inlined_call_operand.hbm [shape: f32[16,128], index: 0, kind: input, shape index: {}]
  %s1 = inlined_call_operand.hbm [shape: f32[16,128], index: 1, kind: input, shape index: {}]
  %s2 = inlined_call_operand.hbm [shape: f32[16,128], index: 2, kind: output, shape index: {}]
  %s3 = sld [smem:[#allocation0]]
  $region26: #{tpu_custom_call.1} parent=0
    _
  %s5 = ssub.s32 1, %s3
  %s6 = scalar_select 0, %s5, %s3
  $region1: #{tpu_custom_call.1} parent=0
    #allocation2 [shape = 'u8[8192]{0}', space=vmem, size = 0x2000, scoped, tag = 'input window, operand 0, single buffered']
    #allocation3 [shape = 's32[1]{0}', space=sflag, size = 0x4, scoped, tag = 'scoped memory for tpu_custom_call.1']
    #allocation4 [shape = 's32[1]{0}', space=sflag, size = 0x4, scoped, tag = 'scoped memory for tpu_custom_call.1']
    #allocation5 [shape = 'u8[8192]{0}', space=vmem, size = 0x2000, scoped, tag = 'input window, operand 1, single buffered']
    #allocation6 [shape = 's32[1]{0}', space=sflag, size = 0x4, scoped, tag = 'scoped memory for tpu_custom_call.1']
    #allocation7 [shape = 'u8[8192]{0}', space=vmem, size = 0x2000, scoped, tag = 'output window, operand 0, single buffered']
    %7 = vsyncpa [#allocation3], 0
    %8 = vsyncpa [#allocation6], 0
    %9 = vsyncpa [#allocation4], 0
    // Predicated region
    $region2: #{tpu_custom_call.1} parent=1 // pred_check
      _
    $region3: #{tpu_custom_call.1} parent=1 // pred_check_branch
      %11 = sbr.rel (0) target = $region5
    $region4: #{tpu_custom_call.1} parent=1 // pred_region
      %13 = vsyncadd [#allocation3], 0
      %s14 = sshll.u32 %s0, 4
      %s15 = int_to_ptr.hbm [resolvable:$true] %s14
      %s16 = sshll.u32 [#allocation2], 4
      %s17 = int_to_ptr.vmem [resolvable:$true] %s16
      %22 = dma.hbm_to_vmem [thread:$0]  %s15, 256, %s17, [#allocation3], 128, 128, 8
    $region5: #{tpu_custom_call.1} parent=1 // pred_fallthru
      _
    // Predicated region
    $region6: #{tpu_custom_call.1} parent=1 // pred_check
      _
    $region7: #{tpu_custom_call.1} parent=1 // pred_check_branch
      %24 = sbr.rel (0) target = $region9
    $region8: #{tpu_custom_call.1} parent=1 // pred_region
      %26 = vsyncadd [#allocation6], 0
      %s27 = sshll.u32 %s1, 4
      %s28 = int_to_ptr.hbm [resolvable:$true] %s27
      %s29 = sshll.u32 [#allocation5], 4
      %s30 = int_to_ptr.vmem [resolvable:$true] %s29
      %35 = dma.hbm_to_vmem [thread:$0]  %s28, 256, %s30, [#allocation6], 128, 128, 8
    $region9: #{tpu_custom_call.1} parent=1 // pred_fallthru
      _
    // Predicated region
    $region10: #{tpu_custom_call.1} parent=1 // pred_check
      _
    $region11: #{tpu_custom_call.1} parent=1 // pred_check_branch
      %37 = sbr.rel (0) target = $region13
    $region12: #{tpu_custom_call.1} parent=1 // pred_region
      %39 = dma.done [#allocation3], 256
    $region13: #{tpu_custom_call.1} parent=1 // pred_fallthru
      _
    // Predicated region
    $region14: #{tpu_custom_call.1} parent=1 // pred_check
      _
    $region15: #{tpu_custom_call.1} parent=1 // pred_check_branch
      %41 = sbr.rel (0) target = $region17
    $region16: #{tpu_custom_call.1} parent=1 // pred_region
      %43 = dma.done [#allocation6], 256
    $region17: #{tpu_custom_call.1} parent=1 // pred_fallthru
      _
    %v44 = vld [vmem:[#allocation2] sm:$0xff]
    %v45 = vld [vmem:[#allocation2 + $0x8] sm:$0xff]
    %v46 = vld [vmem:[#allocation5] sm:$0xff]
    %v47 = vld [vmem:[#allocation5 + $0x8] sm:$0xff]
    %vm48 = vcmp.ge.f32.partialorder %v46, 0.2
    %vm49 = vcmp.ge.f32.partialorder %v47, 0.2
    %v50 = vsel %vm48, %v44, 1.0
    %v51 = vsel %vm49, %v45, 1.0
    %vm52 = vcmp.ge.f32.partialorder %v46, 0.1
    %vm53 = vcmp.ge.f32.partialorder %v47, 0.1
    %v54 = vsel %vm52, %v50, -1.0
    %v55 = vsel %vm53, %v51, -1.0
    %56 = vst [vmem:[#allocation7] sm:$0xff] %v54
    %57 = vst [vmem:[#allocation7 + $0x8] sm:$0xff] %v55
    // Predicated region
    $region18: #{tpu_custom_call.1} parent=1 // pred_check
      _
    $region19: #{tpu_custom_call.1} parent=1 // pred_check_branch
      %59 = sbr.rel (0) target = $region21
    $region20: #{tpu_custom_call.1} parent=1 // pred_region
      %61 = vsyncadd [#allocation4], 0
      %s62 = sshll.u32 [#allocation7], 4
      %s63 = int_to_ptr.vmem [resolvable:$true] %s62
      %s64 = sshll.u32 %s2, 4
      %s65 = int_to_ptr.hbm [resolvable:$true] %s64
      %70 = dma.vmem_to_hbm [thread:$0]  %s63, 256, %s65, [#allocation4], 128, 128, 8
    $region21: #{tpu_custom_call.1} parent=1 // pred_fallthru
      _
    // Predicated region
    $region22: #{tpu_custom_call.1} parent=1 // pred_check
      _
    $region23: #{tpu_custom_call.1} parent=1 // pred_check_branch
      %72 = sbr.rel (0) target = $region25
    $region24: #{tpu_custom_call.1} parent=1 // pred_region
      %74 = dma.done [#allocation4], 256
    $region25: #{tpu_custom_call.1} parent=1 // pred_fallthru
      _
    %75 = vsyncpa [#allocation3], 1
    %76 = vsyncpa [#allocation6], 1
    %77 = vsyncpa [#allocation4], 1

</llo_original>
